<compile_context>
chip_gen: v6e
topology: v6e:2x2x1
jax: 0.10.0
libtpu: 0.0.40
codegen_flags: <defaults>
</compile_context>

<pallas_src>
import math

import jax
import jax.numpy as jnp
from jax.experimental import pallas as pl
from jax.experimental.pallas import tpu as pltpu

_LANES = 128
# Per-block byte cap: with double-buffered input + output (4 live buffers)
# this stays <= 8 MiB resident, far under the 32 MiB scoped VMEM default.
_MAX_BLOCK_BYTES = 2 * 1024 * 1024


def identity_map(x: jax.Array, *args, **kwargs) -> jax.Array:
    """IdentityMap.forward: return x unchanged (no kernel, no HBM traffic)."""
    return x


def _copy_kernel(x_ref, o_ref):
    o_ref[...] = x_ref[...]


def _choose_layout(shape, itemsize):
    """Pick a lane-dense 2-D (rows, cols) view and a row-tile size."""
    total = math.prod(shape)
    if total % _LANES == 0:
        # Lane-dense: last dim a multiple of 128 -> unmasked stores.
        cols = _LANES
        while cols < 1024 and total % (cols * 2) == 0:
            cols *= 2
    else:
        # Fall back: keep the original last dim on lanes (full-dim block).
        cols = shape[-1]
    rows = total // cols

    max_rows = max(8, _MAX_BLOCK_BYTES // (cols * itemsize))
    max_rows -= max_rows % 8  # keep the sublane dim a multiple of 8
    if rows <= max_rows:
        tile_rows = rows      # single block equals the full dim
    else:
        tile_rows = max_rows  # multiple of 8; partial last block is handled
    return rows, cols, tile_rows


@jax.jit
def identity_map_materialized(x: jax.Array) -> jax.Array:
    """Materializing identity (explicit HBM round-trip through a Pallas copy)."""
    if x.ndim == 0:
        # TODO(synk): scalar inputs have no tileable layout; pass through.
        return x
    orig_shape = x.shape
    rows, cols, tile_rows = _choose_layout(orig_shape, x.dtype.itemsize)
    x2 = x.reshape(rows, cols)

    y2 = pl.pallas_call(
        _copy_kernel,
        out_shape=jax.ShapeDtypeStruct((rows, cols), x.dtype),
        grid=(pl.cdiv(rows, tile_rows),),
        in_specs=[pl.BlockSpec((tile_rows, cols), lambda i: (i, 0))],
        out_specs=pl.BlockSpec((tile_rows, cols), lambda i: (i, 0)),
        compiler_params=pltpu.CompilerParams(
            dimension_semantics=("parallel",),
        ),
    )(x2)
    return y2.reshape(orig_shape)


# The module's `config` property has no tensor semantics; expose it for parity.
IDENTITY_MAP_CONFIG = {"mm_projector_type": "identity"}


if __name__ == "__main__":
    key = jax.random.PRNGKey(0)
    # Projector-like input: batch=2, seq=8, hidden=32.
    x = jax.random.normal(key, (2, 8, 32), dtype=jnp.float32)

    # Primary path: pure identity (the recommended zero-cost implementation).
    y = identity_map(x)
    jax.block_until_ready(y)
    assert y.shape == x.shape and y.dtype == x.dtype
    assert bool(jnp.array_equal(y, x))

    # Materializing Pallas path (kept for framework parity); run once and check.
    y_mat = identity_map_materialized(x)
    jax.block_until_ready(y_mat)
    assert y_mat.shape == x.shape and y_mat.dtype == x.dtype
    assert bool(jnp.array_equal(y_mat, x))

    print("KERNEL_OK")
</pallas_src>

<mosaic_0001>
module attributes {stable_mosaic.version = 11 : i64} {
  func.func @_copy_kernel(%arg0: i32, %arg1: memref<1x512xf32, #tpu.memory_space<vmem>>, %arg2: memref<1x512xf32, #tpu.memory_space<vmem>>) attributes {dimension_semantics = [#tpu.dimension_semantics<parallel>], iteration_bounds = array<i64: 1>, scalar_prefetch = 0 : i64, scratch_operands = 0 : i64, tpu.core_type = #tpu.core_type<tc>, window_params = [{transform_indices = @transform_0, window_bounds = array<i64: 1, 512>}, {transform_indices = @transform_1, window_bounds = array<i64: 1, 512>}]} {
    %c0 = arith.constant 0 : index
    %c0_0 = arith.constant 0 : index
    %0 = vector.load %arg1[%c0, %c0_0] : memref<1x512xf32, #tpu.memory_space<vmem>>, vector<1x512xf32>
    %c0_1 = arith.constant 0 : index
    %c0_2 = arith.constant 0 : index
    %1 = vector.load %arg2[%c0_1, %c0_2] : memref<1x512xf32, #tpu.memory_space<vmem>>, vector<1x512xf32>
    tpu.vector_store %arg2[%c0_1, %c0_2], %0 {strides = array<i32>} : memref<1x512xf32, #tpu.memory_space<vmem>>, vector<1x512xf32>,
    return
  }
  func.func @transform_0(%arg0: i32) -> (i32, i32) {
    %c0_i32 = arith.constant 0 : i32
    %c0_i32_0 = arith.constant 0 : i32
    return %arg0, %c0_i32 : i32, i32
  }
  func.func @transform_1(%arg0: i32) -> (i32, i32) {
    %c0_i32 = arith.constant 0 : i32
    %c0_i32_0 = arith.constant 0 : i32
    return %arg0, %c0_i32 : i32, i32
  }
}

</mosaic_0001>

<llo_original>
// kernel: identity_map_materialized.1
$region0: #{identity_map_materialized.1}
  #allocation0 [shape = 'u32[]', space=smem, size = 0x4, offset = 0x4, fixed_abs, tag = 'smem constant byte address 0x4 - core index']
  #allocation1 [shape = 'u32[144,128]{1,0:T(1,128)}', space=vmem, size = 0x12000, scoped, tag = 'internal scratch']
  %s0 = inlined_call_operand.vmem [shape: f32[1,512], index: 0, kind: input, shape index: {}]
  %s1 = inlined_call_operand.vmem [shape: f32[1,512], index: 1, kind: output, shape index: {}]
  %s2 = sld [smem:[#allocation0]]
  $region14: #{identity_map_materialized.1} parent=0
    _
  %s4 = ssub.s32 1, %s2
  %s5 = scalar_select 0, %s4, %s2
  // Predicated region
  $region2: #{identity_map_materialized.1} parent=0 // pred_check
    _
  $region3: #{identity_map_materialized.1} parent=0 // pred_check_branch
    %7 = sbr.rel (0) target = $region5
  $region4: #{identity_map_materialized.1} parent=0 // pred_region
    _
  $region5: #{identity_map_materialized.1} parent=0 // pred_fallthru
    _
  %v8 = vld [vmem:[%s0] sm:$0xf]
  %v9 = vlaneseq
  %vm10 = vcmp.ge.s32.totalorder %v9, 0
  %vm11 = vcmp.lt.s32.totalorder %v9, 512
  %vm12 = vmand %vm10, %vm11
  %13 = vst.msk [vmem:[%s1] sm:$0xf] %vm12, %v8
  // Predicated region
  $region6: #{identity_map_materialized.1} parent=0 // pred_check
    _
  $region7: #{identity_map_materialized.1} parent=0 // pred_check_branch
    %15 = sbr.rel (0) target = $region9
  $region8: #{identity_map_materialized.1} parent=0 // pred_region
    _
  $region9: #{identity_map_materialized.1} parent=0 // pred_fallthru
    _
  // Predicated region
  $region10: #{identity_map_materialized.1} parent=0 // pred_check
    _
  $region11: #{identity_map_materialized.1} parent=0 // pred_check_branch
    %17 = sbr.rel (0) target = $region13
  $region12: #{identity_map_materialized.1} parent=0 // pred_region
    _
  $region13: #{identity_map_materialized.1} parent=0 // pred_fallthru
    _

</llo_original>
